<compile_context>
chip_gen: v5e
topology: v5e:2x2
jax: 0.10.0
libtpu: 0.0.40
codegen_flags: <defaults>
</compile_context>

<pallas_src>
import jax
import jax.numpy as jnp
from jax.experimental import pallas as pl
from jax.experimental.pallas import tpu as pltpu


def _make_repeat_kernel(tile_t: int, nd: int):
    """Copy the (tile_b, nd) input slab into each of the tile_t lane-offset
    slots of the flattened (tile_b, tile_t*nd) output block."""

    def kernel(x_ref, o_ref):
        x = x_ref[...]
        # Static unrolled loop: compile-time offsets, full-nd-wide lane-dense
        # stores, identical (sublane, lane) layout as the input.
        for j in range(tile_t):
            o_ref[:, j * nd:(j + 1) * nd] = x

    return kernel


def _physical_vmem_bytes() -> int:
    try:
        return int(pltpu.get_tpu_info().vmem_capacity_bytes)
    except Exception:
        return 64 << 20  # conservative: v7x has the smallest per-TC VMEM


def _choose_tiles(B, times, nd, itemsize, budget_bytes, sub_mult,
                  target_steps=4, min_block_bytes=2 << 20):
    """Pick (tile_b, tile_t) such that the per-step block set fits the VMEM
    budget, tiles respect sublane/lane alignment, and (when blocks are big
    enough to matter) the grid has >= target_steps steps for pipelining."""

    def b_valid(d):
        return d == B or d % sub_mult == 0

    def t_valid(d):
        # Output block lane width tile_t*nd must be a multiple of 128 or the
        # full extent times*nd.
        return d == times or (d * nd) % 128 == 0

    b_divs = [d for d in range(B, 0, -1) if B % d == 0 and b_valid(d)]
    t_divs = [d for d in range(times, 0, -1) if times % d == 0 and t_valid(d)]
    # Full extents are always valid -> both lists are non-empty.

    def blk_bytes(tb, tt):
        # One input slab + tt output slabs per grid step (pre double-buffer).
        return tb * nd * (1 + tt) * itemsize

    # 1) Largest tile_t that fits the budget with the smallest valid tile_b.
    tb_min = b_divs[-1]
    tile_t = t_divs[-1]
    for tt in t_divs:
        if blk_bytes(tb_min, tt) <= budget_bytes:
            tile_t = tt
            break

    # 2) Largest tile_b that fits the budget with that tile_t.
    tile_b = b_divs[-1]
    for tb in b_divs:
        if blk_bytes(tb, tile_t) <= budget_bytes:
            tile_b = tb
            break

    # 3) Ensure enough grid steps for DMA overlap / megacore split, without
    #    letting blocks get tiny (splitting never adds HBM traffic: the input
    #    block index is constant across the inner `times` grid axis).
    def steps(tb, tt):
        return (B // tb) * (times // tt)

    bi = b_divs.index(tile_b)
    while steps(tile_b, tile_t) < target_steps and bi + 1 < len(b_divs):
        nb = b_divs[bi + 1]
        if blk_bytes(nb, tile_t) < min_block_bytes:
            break
        tile_b = nb
        bi += 1

    ti = t_divs.index(tile_t)
    while steps(tile_b, tile_t) < target_steps and ti + 1 < len(t_divs):
        nt = t_divs[ti + 1]
        if blk_bytes(tile_b, nt) < min_block_bytes:
            break
        tile_t = nt
        ti += 1

    return tile_b, tile_t


def repeat_vector_3d(x: jax.Array, times: int) -> jax.Array:
    """Equivalent of RepeatVector3d(times)(x) for x of shape (B, N, D)."""
    B, N, D = x.shape
    nd = N * D
    itemsize = jnp.dtype(x.dtype).itemsize

    # Sub-32-bit dtypes pack along sublanes: 8 rows f32, 16 bf16, 32 int8.
    sub_mult = max(8, 32 // itemsize)

    physical_vmem = _physical_vmem_bytes()
    # Per-step block-set budget (x2 for double buffering must fit the scoped
    # limit we request): 16 MiB on v7x (64 MiB physical), 32 MiB on v5e/v6e.
    budget_bytes = min(physical_vmem // 4, 32 << 20)

    tile_b, tile_t = _choose_tiles(B, times, nd, itemsize, budget_bytes,
                                   sub_mult)

    block_set = tile_b * nd * (1 + tile_t) * itemsize
    # Always set the scoped-VMEM limit explicitly (v5e's default is 16 MiB),
    # with headroom, capped below the chip's physical VMEM.
    vmem_limit = max(16 << 20, 2 * block_set + (2 << 20))
    vmem_limit = min(vmem_limit, physical_vmem - (2 << 20))

    grid = (B // tile_b, times // tile_t)

    x2 = x.reshape(B, nd)  # lane-dense 2-D slab

    out2 = pl.pallas_call(
        _make_repeat_kernel(tile_t, nd),
        out_shape=jax.ShapeDtypeStruct((B, times * nd), x.dtype),
        grid_spec=pltpu.PrefetchScalarGridSpec(
            num_scalar_prefetch=0,
            grid=grid,
            in_specs=[
                # Input block index constant across the inner `times` axis ->
                # fetched once per batch tile (no re-DMA across t).
                pl.BlockSpec((tile_b, nd), lambda r, t: (r, 0)),
            ],
            # Flattened output: identical (batch->sublane, nd->lane) layout as
            # the input; block lane width is a multiple of 128 (or the full
            # extent), so the writeback is unmasked and lane dense.
            out_specs=pl.BlockSpec((tile_b, tile_t * nd), lambda r, t: (r, t)),
        ),
        compiler_params=pltpu.CompilerParams(
            dimension_semantics=("parallel", "parallel"),
            vmem_limit_bytes=int(vmem_limit),
        ),
        cost_estimate=pl.CostEstimate(
            flops=0,
            transcendentals=0,
            bytes_accessed=(1 + times) * B * nd * itemsize,
        ),
    )(x2)

    return out2.reshape(B, times, N, D)


if __name__ == "__main__":
    key = jax.random.PRNGKey(0)
    B, N, D = 2, 8, 32
    times = 4

    x = jax.random.normal(key, (B, N, D), dtype=jnp.float32)

    out = repeat_vector_3d(x, times)
    out = jax.block_until_ready(out)

    # Reference: pure-JAX equivalent of unsqueeze(1).repeat(1, times, 1, 1).
    ref = jnp.broadcast_to(x[:, None, :, :], (B, times, N, D))

    assert out.shape == (B, times, N, D), out.shape
    assert out.dtype == x.dtype, out.dtype
    assert jnp.array_equal(out, ref), "mismatch vs reference"

    print("KERNEL_OK")
</pallas_src>

<mosaic_0001>
module attributes {stable_mosaic.version = 11 : i64} {
  func.func @kernel(%arg0: i32, %arg1: i32, %arg2: memref<2x256xf32, #tpu.memory_space<vmem>>, %arg3: memref<2x1024xf32, #tpu.memory_space<vmem>>) attributes {dimension_semantics = [#tpu.dimension_semantics<parallel>, #tpu.dimension_semantics<parallel>], iteration_bounds = array<i64: 1, 1>, scalar_prefetch = 0 : i64, scratch_operands = 0 : i64, tpu.core_type = #tpu.core_type<tc>, window_params = [{transform_indices = @transform_0, window_bounds = array<i64: 2, 256>}, {transform_indices = @transform_1, window_bounds = array<i64: 2, 1024>}]} {
    %c0 = arith.constant 0 : index
    %c0_0 = arith.constant 0 : index
    %0 = vector.load %arg2[%c0, %c0_0] : memref<2x256xf32, #tpu.memory_space<vmem>>, vector<2x256xf32>
    %c0_1 = arith.constant 0 : index
    %c0_2 = arith.constant 0 : index
    %1 = vector.load %arg3[%c0_1, %c0_2] : memref<2x1024xf32, #tpu.memory_space<vmem>>, vector<2x256xf32>
    tpu.vector_store %arg3[%c0_1, %c0_2], %0 {strides = array<i32>} : memref<2x1024xf32, #tpu.memory_space<vmem>>, vector<2x256xf32>,
    %c0_3 = arith.constant 0 : index
    %c256 = arith.constant 256 : index
    %2 = vector.load %arg3[%c0_3, %c256] : memref<2x1024xf32, #tpu.memory_space<vmem>>, vector<2x256xf32>
    tpu.vector_store %arg3[%c0_3, %c256], %0 {strides = array<i32>} : memref<2x1024xf32, #tpu.memory_space<vmem>>, vector<2x256xf32>,
    %c0_4 = arith.constant 0 : index
    %c512 = arith.constant 512 : index
    %3 = vector.load %arg3[%c0_4, %c512] : memref<2x1024xf32, #tpu.memory_space<vmem>>, vector<2x256xf32>
    tpu.vector_store %arg3[%c0_4, %c512], %0 {strides = array<i32>} : memref<2x1024xf32, #tpu.memory_space<vmem>>, vector<2x256xf32>,
    %c0_5 = arith.constant 0 : index
    %c768 = arith.constant 768 : index
    %4 = vector.load %arg3[%c0_5, %c768] : memref<2x1024xf32, #tpu.memory_space<vmem>>, vector<2x256xf32>
    tpu.vector_store %arg3[%c0_5, %c768], %0 {strides = array<i32>} : memref<2x1024xf32, #tpu.memory_space<vmem>>, vector<2x256xf32>,
    return
  }
  func.func @transform_0(%arg0: i32, %arg1: i32) -> (i32, i32) {
    %c0_i32 = arith.constant 0 : i32
    %c0_i32_0 = arith.constant 0 : i32
    return %arg0, %c0_i32 : i32, i32
  }
  func.func @transform_1(%arg0: i32, %arg1: i32) -> (i32, i32) {
    %c0_i32 = arith.constant 0 : i32
    return %arg0, %arg1 : i32, i32
  }
}

</mosaic_0001>

<llo_original>
// kernel: tpu_custom_call.1
$region0: #{tpu_custom_call.1}
  #allocation0 [shape = 'u32[]', space=smem, size = 0x4, offset = 0x4, fixed_abs, tag = 'smem constant byte address 0x4 - core index']
  #allocation1 [shape = 'u32[72,128]{1,0:T(1,128)}', space=vmem, size = 0x9000, scoped, tag = 'internal scratch']
  %s0 = inlined_call_operand.hbm [shape: f32[2,256], index: 0, kind: input, shape index: {}]
  %s1 = inlined_call_operand.hbm [shape: f32[2,1024], index: 1, kind: output, shape index: {}]
  %s2 = sld [smem:[#allocation0]]
  $region18: #{tpu_custom_call.1} parent=0
    _
  %s4 = ssub.s32 1, %s2
  %s5 = scalar_select 0, %s4, %s2
  $region1: #{tpu_custom_call.1} parent=0
    #allocation2 [shape = 'u8[2048]{0}', space=vmem, size = 0x800, scoped, tag = 'input window, operand 0, single buffered']
    #allocation3 [shape = 's32[1]{0}', space=sflag, size = 0x4, scoped, tag = 'scoped memory for tpu_custom_call.1']
    #allocation4 [shape = 's32[1]{0}', space=sflag, size = 0x4, scoped, tag = 'scoped memory for tpu_custom_call.1']
    #allocation5 [shape = 'u8[8192]{0}', space=vmem, size = 0x2000, scoped, tag = 'output window, operand 0, single buffered']
    %6 = vsyncpa [#allocation3], 0
    %7 = vsyncpa [#allocation4], 0
    // Predicated region
    $region2: #{tpu_custom_call.1} parent=1 // pred_check
      _
    $region3: #{tpu_custom_call.1} parent=1 // pred_check_branch
      %9 = sbr.rel (0) target = $region5
    $region4: #{tpu_custom_call.1} parent=1 // pred_region
      %11 = vsyncadd [#allocation3], 0
      %s13 = sshll.u32 %s0, 4
      %s14 = int_to_ptr.hbm [resolvable:$true] %s13
      %s15 = sshll.u32 [#allocation2], 4
      %s16 = int_to_ptr.vmem [resolvable:$true] %s15
      %18 = dma.hbm_to_vmem [thread:$0]  %s14, 64, %s16, [#allocation3]
    $region5: #{tpu_custom_call.1} parent=1 // pred_fallthru
      _
    // Predicated region
    $region6: #{tpu_custom_call.1} parent=1 // pred_check
      _
    $region7: #{tpu_custom_call.1} parent=1 // pred_check_branch
      %20 = sbr.rel (0) target = $region9
    $region8: #{tpu_custom_call.1} parent=1 // pred_region
      %22 = dma.done [#allocation3], 64
    $region9: #{tpu_custom_call.1} parent=1 // pred_fallthru
      _
    %v23 = vld [vmem:[#allocation2] sm:$0xf]
    %24 = vst [vmem:[#allocation5] sm:$0xf] %v23
    %25 = vst [vmem:[#allocation5 + $0x4] sm:$0xf] %v23
    %26 = vst [vmem:[#allocation5 + $0x8] sm:$0xf] %v23
    %27 = vst [vmem:[#allocation5 + $0xc] sm:$0xf] %v23
    // Predicated region
    $region10: #{tpu_custom_call.1} parent=1 // pred_check
      _
    $region11: #{tpu_custom_call.1} parent=1 // pred_check_branch
      %29 = sbr.rel (0) target = $region13
    $region12: #{tpu_custom_call.1} parent=1 // pred_region
      %31 = vsyncadd [#allocation4], 0
      %s33 = sshll.u32 [#allocation5], 4
      %s34 = int_to_ptr.vmem [resolvable:$true] %s33
      %s35 = sshll.u32 %s1, 4
      %s36 = int_to_ptr.hbm [resolvable:$true] %s35
      %38 = dma.vmem_to_hbm [thread:$0]  %s34, 256, %s36, [#allocation4]
    $region13: #{tpu_custom_call.1} parent=1 // pred_fallthru
      _
    // Predicated region
    $region14: #{tpu_custom_call.1} parent=1 // pred_check
      _
    $region15: #{tpu_custom_call.1} parent=1 // pred_check_branch
      %40 = sbr.rel (0) target = $region17
    $region16: #{tpu_custom_call.1} parent=1 // pred_region
      %42 = dma.done [#allocation4], 256
    $region17: #{tpu_custom_call.1} parent=1 // pred_fallthru
      _
    %43 = vsyncpa [#allocation3], 1
    %44 = vsyncpa [#allocation4], 1

</llo_original>
